<compile_context>
chip_gen: v5e
topology: v5e:2x2
jax: 0.10.0
libtpu: 0.0.40
codegen_flags: <defaults>
</compile_context>

<pallas_src>
import jax
import jax.numpy as jnp
from jax.experimental import pallas as pl
from jax.experimental.pallas import tpu as pltpu

N_HARM = 6

_MAX_NT = 1024   # lane tile cap: keeps 2x(t tile + sublane-padded out tile) <= ~9 MiB
_MAX_BT = 128    # sublane tile cap

# --- fused-sincos constants (Cephes single-precision) -----------------------
_TWO_OVER_PI = 0.636619772367581343
# pi/2 split for Cody-Waite reduction (each term exactly representable in f32)
_P1 = 1.5703125
_P2 = 4.837512969970703125e-4
_P3 = 7.5497899548918821e-8
# sin(r) ~ r + r*z*(SC0 + z*(SC1 + z*SC2)),  z = r*r,  r in [-pi/4, pi/4]
_SC0 = -1.6666654611e-1
_SC1 = 8.3321608736e-3
_SC2 = -1.9515295891e-4
# cos(r) ~ 1 - 0.5*z + z*z*(CC0 + z*(CC1 + z*CC2))
_CC0 = 4.166664568298827e-2
_CC1 = -1.388731625493765e-3
_CC2 = 2.443315711809948e-5


def _fused_sincos(t):
    """sin(t), cos(t) with a single shared range reduction (all VPU ops)."""
    qf = jnp.floor(t * _TWO_OVER_PI + 0.5)            # nearest multiple of pi/2
    r = ((t - qf * _P1) - qf * _P2) - qf * _P3        # r in [-pi/4, pi/4]
    z = r * r
    sp = ((_SC2 * z + _SC1) * z + _SC0) * z * r + r   # sin(r)
    cp = ((_CC2 * z + _CC1) * z + _CC0) * (z * z) - 0.5 * z + 1.0  # cos(r)
    qi = qf.astype(jnp.int32)
    swap = (qi & 1) == 1                              # odd quadrant: swap sin/cos
    s = jnp.where(swap, cp, sp)
    c = jnp.where(swap, sp, cp)
    s = jnp.where((qi & 2) != 0, -s, s)               # quadrants 2,3: sin negative
    c = jnp.where(((qi + 1) & 2) != 0, -c, c)         # quadrants 1,2: cos negative
    return s, c


def lissajous_kernel(a0_ref, a_ref, b_ref, t_ref, out_ref):
    """a0_ref: (3,) SMEM; a_ref/b_ref: (3, N_HARM) SMEM;
    t_ref: (Bt, Nt) VMEM; out_ref: (Bt, 3, Nt) VMEM."""
    t = t_ref[...]  # (Bt, Nt) float32

    # One trig evaluation per element; higher harmonics via Chebyshev recurrence.
    s1, c1 = _fused_sincos(t)
    two_c1 = c1 + c1

    # Harmonic 1 (a0 folded into the first accumulate).
    chans = [a_ref[ch, 0] * s1 + b_ref[ch, 0] * c1 + a0_ref[ch] for ch in range(3)]

    if N_HARM >= 2:
        s_pp, c_pp = s1, c1
        s_i = two_c1 * s1          # sin(2t)  (sin(0) term is zero)
        c_i = two_c1 * c1 - 1.0    # cos(2t)  (cos(0) term is one)
        for ch in range(3):
            chans[ch] = chans[ch] + a_ref[ch, 1] * s_i + b_ref[ch, 1] * c_i
        # 3-term Chebyshev: x_{n+1} = 2*cos(t)*x_n - x_{n-1}   (4 ops / step)
        for i in range(3, N_HARM + 1):        # unrolled at trace time
            s_n = two_c1 * s_i - s_pp
            c_n = two_c1 * c_i - c_pp
            s_pp, c_pp = s_i, c_i
            s_i, c_i = s_n, c_n
            for ch in range(3):
                chans[ch] = chans[ch] + a_ref[ch, i - 1] * s_i + b_ref[ch, i - 1] * c_i

    # Single store of the whole (Bt, 3, Nt) tile: one relayout + one store
    # stream instead of three masked single-sublane store streams.
    out_ref[...] = jnp.stack(chans, axis=1)


def _choose_tiles(B, N):
    """Pick (bt, nt).  Full-extent blocks for small dims (always legal, no
    raggedness), (8,128)-aligned tiles with masked ragged edges for big dims."""
    bt = B if B <= _MAX_BT else _MAX_BT
    nt = N if N <= _MAX_NT else _MAX_NT
    # Give v7x's second TensorCore work: if the grid would be a single block
    # and the lane axis is wide enough, split it into >= 2 parallel blocks.
    if pl.cdiv(B, bt) * pl.cdiv(N, nt) < 2 and N >= 256:
        nt = 128 * pl.cdiv(pl.cdiv(N, 2), 128)
    return bt, nt


def lissajous_fit(t, a0, a, b):
    """Pallas-backed equivalent of Lissajous_fit.forward.

    t:  (B, N) float32
    a0: (3,)        float32  -> [a0_x, a0_y, a0_z]
    a:  (3, N_HARM) float32  -> rows = [a_x, a_y, a_z]
    b:  (3, N_HARM) float32  -> rows = [b_x, b_y, b_z]
    returns (B, 3, N) float32
    """
    B, N = t.shape
    t = t.astype(jnp.float32)
    bt, nt = _choose_tiles(B, N)
    grid = (pl.cdiv(B, bt), pl.cdiv(N, nt))

    return pl.pallas_call(
        lissajous_kernel,
        out_shape=jax.ShapeDtypeStruct((B, 3, N), jnp.float32),
        grid=grid,
        in_specs=[
            pl.BlockSpec(memory_space=pltpu.MemorySpace.SMEM),  # a0 (3,)
            pl.BlockSpec(memory_space=pltpu.MemorySpace.SMEM),  # a  (3, N_HARM)
            pl.BlockSpec(memory_space=pltpu.MemorySpace.SMEM),  # b  (3, N_HARM)
            pl.BlockSpec((bt, nt), lambda i, j: (i, j)),        # t tile
        ],
        out_specs=pl.BlockSpec((bt, 3, nt), lambda i, j: (i, 0, j)),
        compiler_params=pltpu.CompilerParams(
            dimension_semantics=("parallel", "parallel"),
        ),
    )(a0.astype(jnp.float32), a.astype(jnp.float32), b.astype(jnp.float32), t)


def expanded_ae_forward(X, t, params):
    """Mirror of expanded_AE_model.forward(X, t).

    TODO(synk): adaptEncoder/adaptDecoder were not defined in the source; the
    x_decoded branch is returned as None rather than fabricating its compute.
    """
    del X  # consumed only by the (untranslatable) encoder/decoder branch
    x_decoded = None
    liss_batch = lissajous_fit(t, params["a0"], params["a"], params["b"])
    return x_decoded, liss_batch


def _reference_lissajous(t, a0, a, b):
    """Pure-JAX reference for the Lissajous_fit math (direct sin/cos)."""
    outs = []
    for c in range(3):
        acc = a0[c] + 0.0 * t
        for i in range(1, N_HARM + 1):
            it = float(i) * t
            acc = acc + a[c, i - 1] * jnp.sin(it) + b[c, i - 1] * jnp.cos(it)
        outs.append(acc)
    return jnp.stack(outs, axis=1)  # (B, 3, N)


if __name__ == "__main__":
    key = jax.random.PRNGKey(0)
    k_t, k_a0, k_a, k_b, k_x, k_t2, k_t3 = jax.random.split(key, 7)

    B, N = 2, 128
    # X matches input_dim=[3, 32, 128] from the module __init__ (unused here).
    X = jax.random.normal(k_x, (B, 3, 32, 128), dtype=jnp.float32)
    t = jax.random.uniform(
        k_t, (B, N), dtype=jnp.float32, minval=0.0, maxval=2.0 * jnp.pi
    )

    # Deterministic in-script parameter init (stands in for lissajous_coeffs.pt).
    params = {
        "a0": 0.5 * jax.random.normal(k_a0, (3,), dtype=jnp.float32),
        "a": 0.1 * jax.random.normal(k_a, (3, N_HARM), dtype=jnp.float32),
        "b": 0.1 * jax.random.normal(k_b, (3, N_HARM), dtype=jnp.float32),
    }

    x_decoded, liss = expanded_ae_forward(X, t, params)
    liss = jax.block_until_ready(liss)

    ref = _reference_lissajous(t, params["a0"], params["a"], params["b"])
    assert liss.shape == (B, 3, N), liss.shape
    assert jnp.allclose(liss, ref, atol=3e-5, rtol=1e-5), "mismatch vs reference"

    # Non-128-multiple N: exercised with a full-extent lane block (no padding).
    B2, N2 = 3, 200
    t2 = jax.random.uniform(
        k_t2, (B2, N2), dtype=jnp.float32, minval=0.0, maxval=2.0 * jnp.pi
    )
    liss2 = jax.block_until_ready(
        lissajous_fit(t2, params["a0"], params["a"], params["b"])
    )
    ref2 = _reference_lissajous(t2, params["a0"], params["a"], params["b"])
    assert liss2.shape == (B2, 3, N2), liss2.shape
    assert jnp.allclose(liss2, ref2, atol=3e-5, rtol=1e-5), "mismatch (N=200 case)"

    # Wider N: exercises the v7x lane-split path (>=2 parallel blocks, ragged edge).
    B3, N3 = 5, 640
    t3 = jax.random.uniform(
        k_t3, (B3, N3), dtype=jnp.float32, minval=0.0, maxval=2.0 * jnp.pi
    )
    liss3 = jax.block_until_ready(
        lissajous_fit(t3, params["a0"], params["a"], params["b"])
    )
    ref3 = _reference_lissajous(t3, params["a0"], params["a"], params["b"])
    assert liss3.shape == (B3, 3, N3), liss3.shape
    assert jnp.allclose(liss3, ref3, atol=3e-5, rtol=1e-5), "mismatch (N=640 case)"

    print("KERNEL_OK")
</pallas_src>

<mosaic_0001>
module attributes {stable_mosaic.version = 11 : i64} {
  func.func @lissajous_kernel(%arg0: i32, %arg1: i32, %arg2: memref<3xf32, #tpu.memory_space<smem>>, %arg3: memref<3x6xf32, #tpu.memory_space<smem>>, %arg4: memref<3x6xf32, #tpu.memory_space<smem>>, %arg5: memref<2x128xf32, #tpu.memory_space<vmem>>, %arg6: memref<2x3x128xf32, #tpu.memory_space<vmem>>) attributes {dimension_semantics = [#tpu.dimension_semantics<parallel>, #tpu.dimension_semantics<parallel>], iteration_bounds = array<i64: 1, 1>, scalar_prefetch = 0 : i64, scratch_operands = 0 : i64, tpu.core_type = #tpu.core_type<tc>, window_params = [{transform_indices = @transform_0, window_bounds = array<i64: 3>}, {transform_indices = @transform_1, window_bounds = array<i64: 3, 6>}, {transform_indices = @transform_2, window_bounds = array<i64: 3, 6>}, {transform_indices = @transform_3, window_bounds = array<i64: 2, 128>}, {transform_indices = @transform_4, window_bounds = array<i64: 2, 3, 128>}]} {
    %c0 = arith.constant 0 : index
    %c0_0 = arith.constant 0 : index
    %0 = vector.load %arg5[%c0, %c0_0] : memref<2x128xf32, #tpu.memory_space<vmem>>, vector<2x128xf32>
    %cst = arith.constant 0.636619746 : f32
    %1 = vector.broadcast %cst : f32 to vector<2x128xf32>
    %2 = arith.mulf %0, %1 : vector<2x128xf32>
    %cst_1 = arith.constant 5.000000e-01 : f32
    %3 = vector.broadcast %cst_1 : f32 to vector<2x128xf32>
    %4 = arith.addf %2, %3 : vector<2x128xf32>
    %5 = math.floor %4 : vector<2x128xf32>
    %cst_2 = arith.constant 1.5703125 : f32
    %6 = vector.broadcast %cst_2 : f32 to vector<2x128xf32>
    %7 = arith.mulf %5, %6 : vector<2x128xf32>
    %8 = arith.subf %0, %7 : vector<2x128xf32>
    %cst_3 = arith.constant 4.83751297E-4 : f32
    %9 = vector.broadcast %cst_3 : f32 to vector<2x128xf32>
    %10 = arith.mulf %5, %9 : vector<2x128xf32>
    %11 = arith.subf %8, %10 : vector<2x128xf32>
    %cst_4 = arith.constant 7.549790e-08 : f32
    %12 = vector.broadcast %cst_4 : f32 to vector<2x128xf32>
    %13 = arith.mulf %5, %12 : vector<2x128xf32>
    %14 = arith.subf %11, %13 : vector<2x128xf32>
    %15 = arith.mulf %14, %14 : vector<2x128xf32>
    %cst_5 = arith.constant -1.95152956E-4 : f32
    %16 = vector.broadcast %cst_5 : f32 to vector<2x128xf32>
    %17 = arith.mulf %16, %15 : vector<2x128xf32>
    %cst_6 = arith.constant 0.00833216123 : f32
    %18 = vector.broadcast %cst_6 : f32 to vector<2x128xf32>
    %19 = arith.addf %17, %18 : vector<2x128xf32>
    %20 = arith.mulf %19, %15 : vector<2x128xf32>
    %cst_7 = arith.constant -0.166666552 : f32
    %21 = vector.broadcast %cst_7 : f32 to vector<2x128xf32>
    %22 = arith.addf %20, %21 : vector<2x128xf32>
    %23 = arith.mulf %22, %15 : vector<2x128xf32>
    %24 = arith.mulf %23, %14 : vector<2x128xf32>
    %25 = arith.addf %24, %14 : vector<2x128xf32>
    %cst_8 = arith.constant 2.44331568E-5 : f32
    %26 = vector.broadcast %cst_8 : f32 to vector<2x128xf32>
    %27 = arith.mulf %26, %15 : vector<2x128xf32>
    %cst_9 = arith.constant -0.00138873165 : f32
    %28 = vector.broadcast %cst_9 : f32 to vector<2x128xf32>
    %29 = arith.addf %27, %28 : vector<2x128xf32>
    %30 = arith.mulf %29, %15 : vector<2x128xf32>
    %cst_10 = arith.constant 0.0416666456 : f32
    %31 = vector.broadcast %cst_10 : f32 to vector<2x128xf32>
    %32 = arith.addf %30, %31 : vector<2x128xf32>
    %33 = arith.mulf %15, %15 : vector<2x128xf32>
    %34 = arith.mulf %32, %33 : vector<2x128xf32>
    %cst_11 = arith.constant 5.000000e-01 : f32
    %35 = vector.broadcast %cst_11 : f32 to vector<2x128xf32>
    %36 = arith.mulf %35, %15 : vector<2x128xf32>
    %37 = arith.subf %34, %36 : vector<2x128xf32>
    %cst_12 = arith.constant 1.000000e+00 : f32
    %38 = vector.broadcast %cst_12 : f32 to vector<2x128xf32>
    %39 = arith.addf %37, %38 : vector<2x128xf32>
    %40 = arith.fptosi %5 : vector<2x128xf32> to vector<2x128xi32>
    %c1_i32 = arith.constant 1 : i32
    %41 = vector.broadcast %c1_i32 : i32 to vector<2x128xi32>
    %42 = arith.andi %40, %41 : vector<2x128xi32>
    %c1_i32_13 = arith.constant 1 : i32
    %43 = vector.broadcast %c1_i32_13 : i32 to vector<2x128xi32>
    %44 = arith.cmpi eq, %42, %43 : vector<2x128xi32>
    %45 = arith.select %44, %39, %25 : vector<2x128xi1>, vector<2x128xf32>
    %46 = arith.select %44, %25, %39 : vector<2x128xi1>, vector<2x128xf32>
    %c2_i32 = arith.constant 2 : i32
    %47 = vector.broadcast %c2_i32 : i32 to vector<2x128xi32>
    %48 = arith.andi %40, %47 : vector<2x128xi32>
    %c0_i32 = arith.constant 0 : i32
    %49 = vector.broadcast %c0_i32 : i32 to vector<2x128xi32>
    %50 = arith.cmpi ne, %48, %49 : vector<2x128xi32>
    %cst_14 = arith.constant 0.000000e+00 : f32
    %51 = vector.broadcast %cst_14 : f32 to vector<2x128xf32>
    %52 = arith.subf %51, %45 : vector<2x128xf32>
    %53 = arith.select %50, %52, %45 : vector<2x128xi1>, vector<2x128xf32>
    %c1_i32_15 = arith.constant 1 : i32
    %54 = vector.broadcast %c1_i32_15 : i32 to vector<2x128xi32>
    %55 = arith.addi %40, %54 : vector<2x128xi32>
    %c2_i32_16 = arith.constant 2 : i32
    %56 = vector.broadcast %c2_i32_16 : i32 to vector<2x128xi32>
    %57 = arith.andi %55, %56 : vector<2x128xi32>
    %c0_i32_17 = arith.constant 0 : i32
    %58 = vector.broadcast %c0_i32_17 : i32 to vector<2x128xi32>
    %59 = arith.cmpi ne, %57, %58 : vector<2x128xi32>
    %cst_18 = arith.constant 0.000000e+00 : f32
    %60 = vector.broadcast %cst_18 : f32 to vector<2x128xf32>
    %61 = arith.subf %60, %46 : vector<2x128xf32>
    %62 = arith.select %59, %61, %46 : vector<2x128xi1>, vector<2x128xf32>
    %63 = arith.addf %62, %62 : vector<2x128xf32>
    %c0_19 = arith.constant 0 : index
    %c0_20 = arith.constant 0 : index
    %64 = memref.load %arg3[%c0_19, %c0_20] : memref<3x6xf32, #tpu.memory_space<smem>>
    %65 = vector.broadcast %64 : f32 to vector<2x128xf32>
    %66 = arith.mulf %65, %53 : vector<2x128xf32>
    %c0_21 = arith.constant 0 : index
    %c0_22 = arith.constant 0 : index
    %67 = memref.load %arg4[%c0_21, %c0_22] : memref<3x6xf32, #tpu.memory_space<smem>>
    %68 = vector.broadcast %67 : f32 to vector<2x128xf32>
    %69 = arith.mulf %68, %62 : vector<2x128xf32>
    %70 = arith.addf %66, %69 : vector<2x128xf32>
    %c0_23 = arith.constant 0 : index
    %71 = memref.load %arg2[%c0_23] : memref<3xf32, #tpu.memory_space<smem>>
    %72 = vector.broadcast %71 : f32 to vector<2x128xf32>
    %73 = arith.addf %70, %72 : vector<2x128xf32>
    %c1 = arith.constant 1 : index
    %c0_24 = arith.constant 0 : index
    %74 = memref.load %arg3[%c1, %c0_24] : memref<3x6xf32, #tpu.memory_space<smem>>
    %75 = vector.broadcast %74 : f32 to vector<2x128xf32>
    %76 = arith.mulf %75, %53 : vector<2x128xf32>
    %c1_25 = arith.constant 1 : index
    %c0_26 = arith.constant 0 : index
    %77 = memref.load %arg4[%c1_25, %c0_26] : memref<3x6xf32, #tpu.memory_space<smem>>
    %78 = vector.broadcast %77 : f32 to vector<2x128xf32>
    %79 = arith.mulf %78, %62 : vector<2x128xf32>
    %80 = arith.addf %76, %79 : vector<2x128xf32>
    %c1_27 = arith.constant 1 : index
    %81 = memref.load %arg2[%c1_27] : memref<3xf32, #tpu.memory_space<smem>>
    %82 = vector.broadcast %81 : f32 to vector<2x128xf32>
    %83 = arith.addf %80, %82 : vector<2x128xf32>
    %c2 = arith.constant 2 : index
    %c0_28 = arith.constant 0 : index
    %84 = memref.load %arg3[%c2, %c0_28] : memref<3x6xf32, #tpu.memory_space<smem>>
    %85 = vector.broadcast %84 : f32 to vector<2x128xf32>
    %86 = arith.mulf %85, %53 : vector<2x128xf32>
    %c2_29 = arith.constant 2 : index
    %c0_30 = arith.constant 0 : index
    %87 = memref.load %arg4[%c2_29, %c0_30] : memref<3x6xf32, #tpu.memory_space<smem>>
    %88 = vector.broadcast %87 : f32 to vector<2x128xf32>
    %89 = arith.mulf %88, %62 : vector<2x128xf32>
    %90 = arith.addf %86, %89 : vector<2x128xf32>
    %c2_31 = arith.constant 2 : index
    %91 = memref.load %arg2[%c2_31] : memref<3xf32, #tpu.memory_space<smem>>
    %92 = vector.broadcast %91 : f32 to vector<2x128xf32>
    %93 = arith.addf %90, %92 : vector<2x128xf32>
    %94 = arith.mulf %63, %53 : vector<2x128xf32>
    %95 = arith.mulf %63, %62 : vector<2x128xf32>
    %cst_32 = arith.constant 1.000000e+00 : f32
    %96 = vector.broadcast %cst_32 : f32 to vector<2x128xf32>
    %97 = arith.subf %95, %96 : vector<2x128xf32>
    %c0_33 = arith.constant 0 : index
    %c1_34 = arith.constant 1 : index
    %98 = memref.load %arg3[%c0_33, %c1_34] : memref<3x6xf32, #tpu.memory_space<smem>>
    %99 = vector.broadcast %98 : f32 to vector<2x128xf32>
    %100 = arith.mulf %99, %94 : vector<2x128xf32>
    %101 = arith.addf %73, %100 : vector<2x128xf32>
    %c0_35 = arith.constant 0 : index
    %c1_36 = arith.constant 1 : index
    %102 = memref.load %arg4[%c0_35, %c1_36] : memref<3x6xf32, #tpu.memory_space<smem>>
    %103 = vector.broadcast %102 : f32 to vector<2x128xf32>
    %104 = arith.mulf %103, %97 : vector<2x128xf32>
    %105 = arith.addf %101, %104 : vector<2x128xf32>
    %c1_37 = arith.constant 1 : index
    %c1_38 = arith.constant 1 : index
    %106 = memref.load %arg3[%c1_37, %c1_38] : memref<3x6xf32, #tpu.memory_space<smem>>
    %107 = vector.broadcast %106 : f32 to vector<2x128xf32>
    %108 = arith.mulf %107, %94 : vector<2x128xf32>
    %109 = arith.addf %83, %108 : vector<2x128xf32>
    %c1_39 = arith.constant 1 : index
    %c1_40 = arith.constant 1 : index
    %110 = memref.load %arg4[%c1_39, %c1_40] : memref<3x6xf32, #tpu.memory_space<smem>>
    %111 = vector.broadcast %110 : f32 to vector<2x128xf32>
    %112 = arith.mulf %111, %97 : vector<2x128xf32>
    %113 = arith.addf %109, %112 : vector<2x128xf32>
    %c2_41 = arith.constant 2 : index
    %c1_42 = arith.constant 1 : index
    %114 = memref.load %arg3[%c2_41, %c1_42] : memref<3x6xf32, #tpu.memory_space<smem>>
    %115 = vector.broadcast %114 : f32 to vector<2x128xf32>
    %116 = arith.mulf %115, %94 : vector<2x128xf32>
    %117 = arith.addf %93, %116 : vector<2x128xf32>
    %c2_43 = arith.constant 2 : index
    %c1_44 = arith.constant 1 : index
    %118 = memref.load %arg4[%c2_43, %c1_44] : memref<3x6xf32, #tpu.memory_space<smem>>
    %119 = vector.broadcast %118 : f32 to vector<2x128xf32>
    %120 = arith.mulf %119, %97 : vector<2x128xf32>
    %121 = arith.addf %117, %120 : vector<2x128xf32>
    %122 = arith.mulf %63, %94 : vector<2x128xf32>
    %123 = arith.subf %122, %53 : vector<2x128xf32>
    %124 = arith.mulf %63, %97 : vector<2x128xf32>
    %125 = arith.subf %124, %62 : vector<2x128xf32>
    %c0_45 = arith.constant 0 : index
    %c2_46 = arith.constant 2 : index
    %126 = memref.load %arg3[%c0_45, %c2_46] : memref<3x6xf32, #tpu.memory_space<smem>>
    %127 = vector.broadcast %126 : f32 to vector<2x128xf32>
    %128 = arith.mulf %127, %123 : vector<2x128xf32>
    %129 = arith.addf %105, %128 : vector<2x128xf32>
    %c0_47 = arith.constant 0 : index
    %c2_48 = arith.constant 2 : index
    %130 = memref.load %arg4[%c0_47, %c2_48] : memref<3x6xf32, #tpu.memory_space<smem>>
    %131 = vector.broadcast %130 : f32 to vector<2x128xf32>
    %132 = arith.mulf %131, %125 : vector<2x128xf32>
    %133 = arith.addf %129, %132 : vector<2x128xf32>
    %c1_49 = arith.constant 1 : index
    %c2_50 = arith.constant 2 : index
    %134 = memref.load %arg3[%c1_49, %c2_50] : memref<3x6xf32, #tpu.memory_space<smem>>
    %135 = vector.broadcast %134 : f32 to vector<2x128xf32>
    %136 = arith.mulf %135, %123 : vector<2x128xf32>
    %137 = arith.addf %113, %136 : vector<2x128xf32>
    %c1_51 = arith.constant 1 : index
    %c2_52 = arith.constant 2 : index
    %138 = memref.load %arg4[%c1_51, %c2_52] : memref<3x6xf32, #tpu.memory_space<smem>>
    %139 = vector.broadcast %138 : f32 to vector<2x128xf32>
    %140 = arith.mulf %139, %125 : vector<2x128xf32>
    %141 = arith.addf %137, %140 : vector<2x128xf32>
    %c2_53 = arith.constant 2 : index
    %c2_54 = arith.constant 2 : index
    %142 = memref.load %arg3[%c2_53, %c2_54] : memref<3x6xf32, #tpu.memory_space<smem>>
    %143 = vector.broadcast %142 : f32 to vector<2x128xf32>
    %144 = arith.mulf %143, %123 : vector<2x128xf32>
    %145 = arith.addf %121, %144 : vector<2x128xf32>
    %c2_55 = arith.constant 2 : index
    %c2_56 = arith.constant 2 : index
    %146 = memref.load %arg4[%c2_55, %c2_56] : memref<3x6xf32, #tpu.memory_space<smem>>
    %147 = vector.broadcast %146 : f32 to vector<2x128xf32>
    %148 = arith.mulf %147, %125 : vector<2x128xf32>
    %149 = arith.addf %145, %148 : vector<2x128xf32>
    %150 = arith.mulf %63, %123 : vector<2x128xf32>
    %151 = arith.subf %150, %94 : vector<2x128xf32>
    %152 = arith.mulf %63, %125 : vector<2x128xf32>
    %153 = arith.subf %152, %97 : vector<2x128xf32>
    %c0_57 = arith.constant 0 : index
    %c3 = arith.constant 3 : index
    %154 = memref.load %arg3[%c0_57, %c3] : memref<3x6xf32, #tpu.memory_space<smem>>
    %155 = vector.broadcast %154 : f32 to vector<2x128xf32>
    %156 = arith.mulf %155, %151 : vector<2x128xf32>
    %157 = arith.addf %133, %156 : vector<2x128xf32>
    %c0_58 = arith.constant 0 : index
    %c3_59 = arith.constant 3 : index
    %158 = memref.load %arg4[%c0_58, %c3_59] : memref<3x6xf32, #tpu.memory_space<smem>>
    %159 = vector.broadcast %158 : f32 to vector<2x128xf32>
    %160 = arith.mulf %159, %153 : vector<2x128xf32>
    %161 = arith.addf %157, %160 : vector<2x128xf32>
    %c1_60 = arith.constant 1 : index
    %c3_61 = arith.constant 3 : index
    %162 = memref.load %arg3[%c1_60, %c3_61] : memref<3x6xf32, #tpu.memory_space<smem>>
    %163 = vector.broadcast %162 : f32 to vector<2x128xf32>
    %164 = arith.mulf %163, %151 : vector<2x128xf32>
    %165 = arith.addf %141, %164 : vector<2x128xf32>
    %c1_62 = arith.constant 1 : index
    %c3_63 = arith.constant 3 : index
    %166 = memref.load %arg4[%c1_62, %c3_63] : memref<3x6xf32, #tpu.memory_space<smem>>
    %167 = vector.broadcast %166 : f32 to vector<2x128xf32>
    %168 = arith.mulf %167, %153 : vector<2x128xf32>
    %169 = arith.addf %165, %168 : vector<2x128xf32>
    %c2_64 = arith.constant 2 : index
    %c3_65 = arith.constant 3 : index
    %170 = memref.load %arg3[%c2_64, %c3_65] : memref<3x6xf32, #tpu.memory_space<smem>>
    %171 = vector.broadcast %170 : f32 to vector<2x128xf32>
    %172 = arith.mulf %171, %151 : vector<2x128xf32>
    %173 = arith.addf %149, %172 : vector<2x128xf32>
    %c2_66 = arith.constant 2 : index
    %c3_67 = arith.constant 3 : index
    %174 = memref.load %arg4[%c2_66, %c3_67] : memref<3x6xf32, #tpu.memory_space<smem>>
    %175 = vector.broadcast %174 : f32 to vector<2x128xf32>
    %176 = arith.mulf %175, %153 : vector<2x128xf32>
    %177 = arith.addf %173, %176 : vector<2x128xf32>
    %178 = arith.mulf %63, %151 : vector<2x128xf32>
    %179 = arith.subf %178, %123 : vector<2x128xf32>
    %180 = arith.mulf %63, %153 : vector<2x128xf32>
    %181 = arith.subf %180, %125 : vector<2x128xf32>
    %c0_68 = arith.constant 0 : index
    %c4 = arith.constant 4 : index
    %182 = memref.load %arg3[%c0_68, %c4] : memref<3x6xf32, #tpu.memory_space<smem>>
    %183 = vector.broadcast %182 : f32 to vector<2x128xf32>
    %184 = arith.mulf %183, %179 : vector<2x128xf32>
    %185 = arith.addf %161, %184 : vector<2x128xf32>
    %c0_69 = arith.constant 0 : index
    %c4_70 = arith.constant 4 : index
    %186 = memref.load %arg4[%c0_69, %c4_70] : memref<3x6xf32, #tpu.memory_space<smem>>
    %187 = vector.broadcast %186 : f32 to vector<2x128xf32>
    %188 = arith.mulf %187, %181 : vector<2x128xf32>
    %189 = arith.addf %185, %188 : vector<2x128xf32>
    %c1_71 = arith.constant 1 : index
    %c4_72 = arith.constant 4 : index
    %190 = memref.load %arg3[%c1_71, %c4_72] : memref<3x6xf32, #tpu.memory_space<smem>>
    %191 = vector.broadcast %190 : f32 to vector<2x128xf32>
    %192 = arith.mulf %191, %179 : vector<2x128xf32>
    %193 = arith.addf %169, %192 : vector<2x128xf32>
    %c1_73 = arith.constant 1 : index
    %c4_74 = arith.constant 4 : index
    %194 = memref.load %arg4[%c1_73, %c4_74] : memref<3x6xf32, #tpu.memory_space<smem>>
    %195 = vector.broadcast %194 : f32 to vector<2x128xf32>
    %196 = arith.mulf %195, %181 : vector<2x128xf32>
    %197 = arith.addf %193, %196 : vector<2x128xf32>
    %c2_75 = arith.constant 2 : index
    %c4_76 = arith.constant 4 : index
    %198 = memref.load %arg3[%c2_75, %c4_76] : memref<3x6xf32, #tpu.memory_space<smem>>
    %199 = vector.broadcast %198 : f32 to vector<2x128xf32>
    %200 = arith.mulf %199, %179 : vector<2x128xf32>
    %201 = arith.addf %177, %200 : vector<2x128xf32>
    %c2_77 = arith.constant 2 : index
    %c4_78 = arith.constant 4 : index
    %202 = memref.load %arg4[%c2_77, %c4_78] : memref<3x6xf32, #tpu.memory_space<smem>>
    %203 = vector.broadcast %202 : f32 to vector<2x128xf32>
    %204 = arith.mulf %203, %181 : vector<2x128xf32>
    %205 = arith.addf %201, %204 : vector<2x128xf32>
    %206 = arith.mulf %63, %179 : vector<2x128xf32>
    %207 = arith.subf %206, %151 : vector<2x128xf32>
    %208 = arith.mulf %63, %181 : vector<2x128xf32>
    %209 = arith.subf %208, %153 : vector<2x128xf32>
    %c0_79 = arith.constant 0 : index
    %c5 = arith.constant 5 : index
    %210 = memref.load %arg3[%c0_79, %c5] : memref<3x6xf32, #tpu.memory_space<smem>>
    %211 = vector.broadcast %210 : f32 to vector<2x128xf32>
    %212 = arith.mulf %211, %207 : vector<2x128xf32>
    %213 = arith.addf %189, %212 : vector<2x128xf32>
    %c0_80 = arith.constant 0 : index
    %c5_81 = arith.constant 5 : index
    %214 = memref.load %arg4[%c0_80, %c5_81] : memref<3x6xf32, #tpu.memory_space<smem>>
    %215 = vector.broadcast %214 : f32 to vector<2x128xf32>
    %216 = arith.mulf %215, %209 : vector<2x128xf32>
    %217 = arith.addf %213, %216 : vector<2x128xf32>
    %c1_82 = arith.constant 1 : index
    %c5_83 = arith.constant 5 : index
    %218 = memref.load %arg3[%c1_82, %c5_83] : memref<3x6xf32, #tpu.memory_space<smem>>
    %219 = vector.broadcast %218 : f32 to vector<2x128xf32>
    %220 = arith.mulf %219, %207 : vector<2x128xf32>
    %221 = arith.addf %197, %220 : vector<2x128xf32>
    %c1_84 = arith.constant 1 : index
    %c5_85 = arith.constant 5 : index
    %222 = memref.load %arg4[%c1_84, %c5_85] : memref<3x6xf32, #tpu.memory_space<smem>>
    %223 = vector.broadcast %222 : f32 to vector<2x128xf32>
    %224 = arith.mulf %223, %209 : vector<2x128xf32>
    %225 = arith.addf %221, %224 : vector<2x128xf32>
    %c2_86 = arith.constant 2 : index
    %c5_87 = arith.constant 5 : index
    %226 = memref.load %arg3[%c2_86, %c5_87] : memref<3x6xf32, #tpu.memory_space<smem>>
    %227 = vector.broadcast %226 : f32 to vector<2x128xf32>
    %228 = arith.mulf %227, %207 : vector<2x128xf32>
    %229 = arith.addf %205, %228 : vector<2x128xf32>
    %c2_88 = arith.constant 2 : index
    %c5_89 = arith.constant 5 : index
    %230 = memref.load %arg4[%c2_88, %c5_89] : memref<3x6xf32, #tpu.memory_space<smem>>
    %231 = vector.broadcast %230 : f32 to vector<2x128xf32>
    %232 = arith.mulf %231, %209 : vector<2x128xf32>
    %233 = arith.addf %229, %232 : vector<2x128xf32>
    %234 = vector.shape_cast %217 : vector<2x128xf32> to vector<2x1x128xf32>
    %235 = vector.shape_cast %225 : vector<2x128xf32> to vector<2x1x128xf32>
    %236 = vector.shape_cast %233 : vector<2x128xf32> to vector<2x1x128xf32>
    %237 = tpu.concatenate %234, %235, %236 in 1 : vector<2x1x128xf32>, vector<2x1x128xf32>, vector<2x1x128xf32> -> vector<2x3x128xf32>
    %c0_90 = arith.constant 0 : index
    %c0_91 = arith.constant 0 : index
    %c0_92 = arith.constant 0 : index
    %238 = vector.load %arg6[%c0_90, %c0_91, %c0_92] : memref<2x3x128xf32, #tpu.memory_space<vmem>>, vector<2x3x128xf32>
    tpu.vector_store %arg6[%c0_90, %c0_91, %c0_92], %237 {strides = array<i32>} : memref<2x3x128xf32, #tpu.memory_space<vmem>>, vector<2x3x128xf32>,
    return
  }
  func.func @transform_0(%arg0: i32, %arg1: i32) -> i32 {
    %c0_i32 = arith.constant 0 : i32
    %c0_i32_0 = arith.constant 0 : i32
    return %c0_i32 : i32
  }
  func.func @transform_1(%arg0: i32, %arg1: i32) -> (i32, i32) {
    %c0_i32 = arith.constant 0 : i32
    %c0_i32_0 = arith.constant 0 : i32
    %c0_i32_1 = arith.constant 0 : i32
    return %c0_i32, %c0_i32_0 : i32, i32
  }
  func.func @transform_2(%arg0: i32, %arg1: i32) -> (i32, i32) {
    %c0_i32 = arith.constant 0 : i32
    %c0_i32_0 = arith.constant 0 : i32
    %c0_i32_1 = arith.constant 0 : i32
    return %c0_i32, %c0_i32_0 : i32, i32
  }
  func.func @transform_3(%arg0: i32, %arg1: i32) -> (i32, i32) {
    %c0_i32 = arith.constant 0 : i32
    return %arg0, %arg1 : i32, i32
  }
  func.func @transform_4(%arg0: i32, %arg1: i32) -> (i32, i32, i32) {
    %c0_i32 = arith.constant 0 : i32
    %c0_i32_0 = arith.constant 0 : i32
    return %arg0, %c0_i32, %arg1 : i32, i32, i32
  }
}

</mosaic_0001>

<llo_original>
// kernel: tpu_custom_call.1
$region0: #{tpu_custom_call.1}
  #allocation0 [shape = 'u32[]', space=smem, size = 0x4, offset = 0x4, fixed_abs, tag = 'smem constant byte address 0x4 - core index']
  #allocation1 [shape = 'u32[72,128]{1,0:T(1,128)}', space=vmem, size = 0x9000, scoped, tag = 'internal scratch']
  %s0 = inlined_call_operand.hbm [shape: f32[3], index: 0, kind: input, shape index: {}]
  %s1 = inlined_call_operand.hbm [shape: f32[3,6], index: 1, kind: input, shape index: {}]
  %s2 = inlined_call_operand.hbm [shape: f32[3,6], index: 2, kind: input, shape index: {}]
  %s3 = inlined_call_operand.vmem [shape: f32[2,128], index: 3, kind: input, shape index: {}]
  %s4 = inlined_call_operand.vmem [shape: f32[2,3,128], index: 4, kind: output, shape index: {}]
  %s5 = sld [smem:[#allocation0]]
  $region38: #{tpu_custom_call.1} parent=0
    _
  %s7 = ssub.s32 1, %s5
  %s8 = scalar_select 0, %s7, %s5
  $region1: #{tpu_custom_call.1} parent=0
    #allocation2 [shape = 'u8[512]{0}', space=smem, size = 0x200, scoped, tag = 'input window, operand 0, single buffered']
    #allocation3 [shape = 's32[1]{0}', space=sflag, size = 0x4, scoped, tag = 'scoped memory for tpu_custom_call.1']
    #allocation4 [shape = 'u8[2048]{0}', space=smem, size = 0x800, scoped, tag = 'input window, operand 1, single buffered']
    #allocation5 [shape = 's32[1]{0}', space=sflag, size = 0x4, scoped, tag = 'scoped memory for tpu_custom_call.1']
    #allocation6 [shape = 'u8[2048]{0}', space=smem, size = 0x800, scoped, tag = 'input window, operand 2, single buffered']
    %9 = vsyncpa [#allocation3], 0
    %10 = vsyncpa [#allocation5], 0
    // Predicated region
    $region2: #{tpu_custom_call.1} parent=1 // pred_check
      _
    $region3: #{tpu_custom_call.1} parent=1 // pred_check_branch
      %12 = sbr.rel (0) target = $region5
    $region4: #{tpu_custom_call.1} parent=1 // pred_region
      %14 = vsyncadd [#allocation3], 0
      %s16 = sshll.u32 %s0, 4
      %s17 = int_to_ptr.hbm [resolvable:$true] %s16
      %19 = dma.hbm_to_smem %s17, 16, [#allocation2], [#allocation3]
    $region5: #{tpu_custom_call.1} parent=1 // pred_fallthru
      _
    // Predicated region
    $region6: #{tpu_custom_call.1} parent=1 // pred_check
      _
    $region7: #{tpu_custom_call.1} parent=1 // pred_check_branch
      %21 = sbr.rel (0) target = $region9
    $region8: #{tpu_custom_call.1} parent=1 // pred_region
      %23 = vsyncadd [#allocation5], 0
      %s25 = sshll.u32 %s1, 4
      %s26 = int_to_ptr.hbm [resolvable:$true] %s25
      %28 = dma.hbm_to_smem %s26, 64, [#allocation4], [#allocation5]
    $region9: #{tpu_custom_call.1} parent=1 // pred_fallthru
      _
    // Predicated region
    $region10: #{tpu_custom_call.1} parent=1 // pred_check
      _
    $region11: #{tpu_custom_call.1} parent=1 // pred_check_branch
      %30 = sbr.rel (0) target = $region13
    $region12: #{tpu_custom_call.1} parent=1 // pred_region
      %32 = vsyncadd [#allocation5], 0
      %s34 = sshll.u32 %s2, 4
      %s35 = int_to_ptr.hbm [resolvable:$true] %s34
      %37 = dma.hbm_to_smem %s35, 64, [#allocation6], [#allocation5]
    $region13: #{tpu_custom_call.1} parent=1 // pred_fallthru
      _
    // Predicated region
    $region14: #{tpu_custom_call.1} parent=1 // pred_check
      _
    $region15: #{tpu_custom_call.1} parent=1 // pred_check_branch
      %39 = sbr.rel (0) target = $region17
    $region16: #{tpu_custom_call.1} parent=1 // pred_region
      _
    $region17: #{tpu_custom_call.1} parent=1 // pred_fallthru
      _
    // Predicated region
    $region18: #{tpu_custom_call.1} parent=1 // pred_check
      _
    $region19: #{tpu_custom_call.1} parent=1 // pred_check_branch
      %41 = sbr.rel (0) target = $region21
    $region20: #{tpu_custom_call.1} parent=1 // pred_region
      %43 = dma.done [#allocation3], 16
    $region21: #{tpu_custom_call.1} parent=1 // pred_fallthru
      _
    // Predicated region
    $region22: #{tpu_custom_call.1} parent=1 // pred_check
      _
    $region23: #{tpu_custom_call.1} parent=1 // pred_check_branch
      %45 = sbr.rel (0) target = $region25
    $region24: #{tpu_custom_call.1} parent=1 // pred_region
      %47 = dma.done [#allocation5], 64
    $region25: #{tpu_custom_call.1} parent=1 // pred_fallthru
      _
    // Predicated region
    $region26: #{tpu_custom_call.1} parent=1 // pred_check
      _
    $region27: #{tpu_custom_call.1} parent=1 // pred_check_branch
      %49 = sbr.rel (0) target = $region29
    $region28: #{tpu_custom_call.1} parent=1 // pred_region
      %51 = dma.done [#allocation5], 64
    $region29: #{tpu_custom_call.1} parent=1 // pred_fallthru
      _
    %52 = sfence
    %v53 = vld [vmem:[%s3] sm:$0x3]
    %v54 = vmul.f32 %v53, 0.63661975
    %v55 = vadd.f32 %v54, 0.5
    %v56 = vfloor.f32 %v55
    %v57 = vmul.f32 %v56, 1.5703125
    %v58 = vsub.f32 %v53, %v57
    %v59 = vmul.f32 %v56, 0.0004837513
    %v60 = vsub.f32 %v58, %v59
    %v61 = vmul.f32 %v56, 7.54979e-08
    %v62 = vsub.f32 %v60, %v61
    %v63 = vmul.f32 %v62, %v62
    %v64 = vmul.f32 %v63, -0.00019515296
    %v65 = vadd.f32 %v64, 0.008332161
    %v66 = vmul.f32 %v65, %v63
    %v67 = vadd.f32 %v66, -0.16666655
    %v68 = vmul.f32 %v67, %v63
    %v69 = vmul.f32 %v68, %v62
    %v70 = vadd.f32 %v69, %v62
    %v71 = vmul.f32 %v63, 2.4433157e-05
    %v72 = vadd.f32 %v71, -0.0013887316
    %v73 = vmul.f32 %v72, %v63
    %v74 = vadd.f32 %v73, 0.041666646
    %v75 = vmul.f32 %v63, %v63
    %v76 = vmul.f32 %v74, %v75
    %v77 = vmul.f32 %v63, 0.5
    %v78 = vsub.f32 %v76, %v77
    %v79 = vadd.f32 %v78, 1.0
    %v80 = vcvt.f32.s32.to.zero.pseudo %v56
    %v81 = vand.u32 %v80, 1
    %vm82 = vcmp.eq.s32.totalorder %v81, 1
    %v83 = vsel %vm82, %v79, %v70
    %v84 = vsel %vm82, %v70, %v79
    %v85 = vand.u32 %v80, 2
    %vm86 = vcmp.ne.s32.totalorder %v85, 0
    %v87 = vsub.f32 0.0, %v83
    %v88 = vsel %vm86, %v87, %v83
    %v89 = vadd.s32 %v80, 1
    %v90 = vand.u32 %v89, 2
    %vm91 = vcmp.ne.s32.totalorder %v90, 0
    %v92 = vsub.f32 0.0, %v84
    %v93 = vsel %vm91, %v92, %v84
    %v94 = vadd.f32 %v93, %v93
    %s95 = sld [smem:[#allocation4]]
    %v96 = vstv %s95
    %v97 = vmul.f32 %v96, %v88
    %s98 = sld [smem:[#allocation6]]
    %v99 = vstv %s98
    %v100 = vmul.f32 %v99, %v93
    %v101 = vadd.f32 %v97, %v100
    %s102 = sld [smem:[#allocation2]]
    %v103 = vstv %s102
    %v104 = vadd.f32 %v101, %v103
    %s105 = sld [smem:[#allocation4 + $0x80]]
    %v106 = vstv %s105
    %v107 = vmul.f32 %v106, %v88
    %s108 = sld [smem:[#allocation6 + $0x80]]
    %v109 = vstv %s108
    %v110 = vmul.f32 %v109, %v93
    %v111 = vadd.f32 %v107, %v110
    %s112 = sld [smem:[#allocation2 + $0x1]]
    %v113 = vstv %s112
    %v114 = vadd.f32 %v111, %v113
    %s115 = sld [smem:[#allocation4 + $0x100]]
    %v116 = vstv %s115
    %v117 = vmul.f32 %v116, %v88
    %s118 = sld [smem:[#allocation6 + $0x100]]
    %v119 = vstv %s118
    %v120 = vmul.f32 %v119, %v93
    %v121 = vadd.f32 %v117, %v120
    %s122 = sld [smem:[#allocation2 + $0x2]]
    %v123 = vstv %s122
    %v124 = vadd.f32 %v121, %v123
    %v125 = vmul.f32 %v94, %v88
    %v126 = vmul.f32 %v94, %v93
    %v127 = vsub.f32 %v126, 1.0
    %s128 = sld [smem:[#allocation4 + $0x1]]
    %v129 = vstv %s128
    %v130 = vmul.f32 %v129, %v125
    %v131 = vadd.f32 %v104, %v130
    %s132 = sld [smem:[#allocation6 + $0x1]]
    %v133 = vstv %s132
    %v134 = vmul.f32 %v133, %v127
    %v135 = vadd.f32 %v131, %v134
    %s136 = sld [smem:[#allocation4 + $0x81]]
    %v137 = vstv %s136
    %v138 = vmul.f32 %v137, %v125
    %v139 = vadd.f32 %v114, %v138
    %s140 = sld [smem:[#allocation6 + $0x81]]
    %v141 = vstv %s140
    %v142 = vmul.f32 %v141, %v127
    %v143 = vadd.f32 %v139, %v142
    %s144 = sld [smem:[#allocation4 + $0x101]]
    %v145 = vstv %s144
    %v146 = vmul.f32 %v145, %v125
    %v147 = vadd.f32 %v124, %v146
    %s148 = sld [smem:[#allocation6 + $0x101]]
    %v149 = vstv %s148
    %v150 = vmul.f32 %v149, %v127
    %v151 = vadd.f32 %v147, %v150
    %v152 = vmul.f32 %v94, %v125
    %v153 = vsub.f32 %v152, %v88
    %v154 = vmul.f32 %v94, %v127
    %v155 = vsub.f32 %v154, %v93
    %s156 = sld [smem:[#allocation4 + $0x2]]
    %v157 = vstv %s156
    %v158 = vmul.f32 %v157, %v153
    %v159 = vadd.f32 %v135, %v158
    %s160 = sld [smem:[#allocation6 + $0x2]]
    %v161 = vstv %s160
    %v162 = vmul.f32 %v161, %v155
    %v163 = vadd.f32 %v159, %v162
    %s164 = sld [smem:[#allocation4 + $0x82]]
    %v165 = vstv %s164
    %v166 = vmul.f32 %v165, %v153
    %v167 = vadd.f32 %v143, %v166
    %s168 = sld [smem:[#allocation6 + $0x82]]
    %v169 = vstv %s168
    %v170 = vmul.f32 %v169, %v155
    %v171 = vadd.f32 %v167, %v170
    %s172 = sld [smem:[#allocation4 + $0x102]]
    %v173 = vstv %s172
    %v174 = vmul.f32 %v173, %v153
    %v175 = vadd.f32 %v151, %v174
    %s176 = sld [smem:[#allocation6 + $0x102]]
    %v177 = vstv %s176
    %v178 = vmul.f32 %v177, %v155
    %v179 = vadd.f32 %v175, %v178
    %v180 = vmul.f32 %v94, %v153
    %v181 = vsub.f32 %v180, %v125
    %v182 = vmul.f32 %v94, %v155
    %v183 = vsub.f32 %v182, %v127
    %s184 = sld [smem:[#allocation4 + $0x3]]
    %v185 = vstv %s184
    %v186 = vmul.f32 %v185, %v181
    %v187 = vadd.f32 %v163, %v186
    %s188 = sld [smem:[#allocation6 + $0x3]]
    %v189 = vstv %s188
    %v190 = vmul.f32 %v189, %v183
    %v191 = vadd.f32 %v187, %v190
    %s192 = sld [smem:[#allocation4 + $0x83]]
    %v193 = vstv %s192
    %v194 = vmul.f32 %v193, %v181
    %v195 = vadd.f32 %v171, %v194
    %s196 = sld [smem:[#allocation6 + $0x83]]
    %v197 = vstv %s196
    %v198 = vmul.f32 %v197, %v183
    %v199 = vadd.f32 %v195, %v198
    %s200 = sld [smem:[#allocation4 + $0x103]]
    %v201 = vstv %s200
    %v202 = vmul.f32 %v201, %v181
    %v203 = vadd.f32 %v179, %v202
    %s204 = sld [smem:[#allocation6 + $0x103]]
    %v205 = vstv %s204
    %v206 = vmul.f32 %v205, %v183
    %v207 = vadd.f32 %v203, %v206
    %v208 = vmul.f32 %v94, %v181
    %v209 = vsub.f32 %v208, %v153
    %v210 = vmul.f32 %v94, %v183
    %v211 = vsub.f32 %v210, %v155
    %s212 = sld [smem:[#allocation4 + $0x4]]
    %v213 = vstv %s212
    %v214 = vmul.f32 %v213, %v209
    %v215 = vadd.f32 %v191, %v214
    %s216 = sld [smem:[#allocation6 + $0x4]]
    %v217 = vstv %s216
    %v218 = vmul.f32 %v217, %v211
    %v219 = vadd.f32 %v215, %v218
    %s220 = sld [smem:[#allocation4 + $0x84]]
    %v221 = vstv %s220
    %v222 = vmul.f32 %v221, %v209
    %v223 = vadd.f32 %v199, %v222
    %s224 = sld [smem:[#allocation6 + $0x84]]
    %v225 = vstv %s224
    %v226 = vmul.f32 %v225, %v211
    %v227 = vadd.f32 %v223, %v226
    %s228 = sld [smem:[#allocation4 + $0x104]]
    %v229 = vstv %s228
    %v230 = vmul.f32 %v229, %v209
    %v231 = vadd.f32 %v207, %v230
    %s232 = sld [smem:[#allocation6 + $0x104]]
    %v233 = vstv %s232
    %v234 = vmul.f32 %v233, %v211
    %v235 = vadd.f32 %v231, %v234
    %v236 = vmul.f32 %v94, %v209
    %v237 = vsub.f32 %v236, %v181
    %v238 = vmul.f32 %v94, %v211
    %v239 = vsub.f32 %v238, %v183
    %s240 = sld [smem:[#allocation4 + $0x5]]
    %v241 = vstv %s240
    %v242 = vmul.f32 %v241, %v237
    %v243 = vadd.f32 %v219, %v242
    %s244 = sld [smem:[#allocation6 + $0x5]]
    %v245 = vstv %s244
    %v246 = vmul.f32 %v245, %v239
    %v247 = vadd.f32 %v243, %v246
    %s248 = sld [smem:[#allocation4 + $0x85]]
    %v249 = vstv %s248
    %v250 = vmul.f32 %v249, %v237
    %v251 = vadd.f32 %v227, %v250
    %s252 = sld [smem:[#allocation6 + $0x85]]
    %v253 = vstv %s252
    %v254 = vmul.f32 %v253, %v239
    %v255 = vadd.f32 %v251, %v254
    %s256 = sld [smem:[#allocation4 + $0x105]]
    %v257 = vstv %s256
    %v258 = vmul.f32 %v257, %v237
    %v259 = vadd.f32 %v235, %v258
    %s260 = sld [smem:[#allocation6 + $0x105]]
    %v261 = vstv %s260
    %v262 = vmul.f32 %v261, %v239
    %v263 = vadd.f32 %v259, %v262
    %v265 = vrot.slane %v247, 1
    %v268 = vrot.slane %v255, 1
    %v270 = vrot.slane %v263, 1
    %v271 = vperm.slane %v255, 0
    %v272 = vperm.slane %v268, 0
    %v275 = vperm.slane %v263, 0
    %v276 = vperm.slane %v270, 0
    %vm279 = vcmask 1040384
    %v280 = vsel %vm279, %v247, %v271
    %v281 = vsel %vm279, %v265, %v272
    %vm282 = vcmask 1041408
    %v283 = vsel %vm282, %v280, %v275
    %v284 = vsel %vm282, %v281, %v276
    %285 = vst [vmem:[%s4] sm:$0x7] %v283
    %286 = vst [vmem:[%s4 + $0x4] sm:$0x7] %v284
    // Predicated region
    $region30: #{tpu_custom_call.1} parent=1 // pred_check
      _
    $region31: #{tpu_custom_call.1} parent=1 // pred_check_branch
      %288 = sbr.rel (0) target = $region33
    $region32: #{tpu_custom_call.1} parent=1 // pred_region
      _
    $region33: #{tpu_custom_call.1} parent=1 // pred_fallthru
      _
    // Predicated region
    $region34: #{tpu_custom_call.1} parent=1 // pred_check
      _
    $region35: #{tpu_custom_call.1} parent=1 // pred_check_branch
      %290 = sbr.rel (0) target = $region37
    $region36: #{tpu_custom_call.1} parent=1 // pred_region
      _
    $region37: #{tpu_custom_call.1} parent=1 // pred_fallthru
      _
    %291 = vsyncpa [#allocation3], 1
    %292 = vsyncpa [#allocation5], 1

</llo_original>
